<compile_context>
chip_gen: v5e
topology: v5e:2x2
jax: 0.10.0
libtpu: 0.0.40
codegen_flags: <defaults>
</compile_context>

<pallas_src>
import contextlib
import math
import os

import jax
import jax.numpy as jnp
import numpy as np
from jax.experimental import pallas as pl
from jax.experimental.pallas import tpu as pltpu

# Padded (input + output) block bytes per grid step; the default double
# buffering makes the live footprint ~2x this.
_BLOCK_PAIR_BUDGET_BYTES = 4 * 1024 * 1024
# Cap on one packed output row (k*C elements) so out blocks stay modest.
_MAX_PACKED_ROW_BYTES = 8 * 1024
# Aim for at least this many total grid steps (pipelining + v7x 2-TC balance).
_MIN_GRID_STEPS = 8
# Scoped VMEM limit: generous vs. our ~16 MiB padded working set, but safely
# below v7x's 64 MiB physical VMEM (v5e/v6e have 128 MiB).
_VMEM_LIMIT_BYTES = 32 * 1024 * 1024

# Cache: does the packed (lane-dense) kernel lower on this toolchain for a
# given configuration?  -> bool
_PACK_OK = {}


def _round_up(x, m):
    return (x + m - 1) // m * m


def _sublanes(dtype):
    # 32-bit types use 8 sublanes per vreg group, 16-bit 16, 8-bit 32.
    return max(8, 32 // jnp.dtype(dtype).itemsize)


@contextlib.contextmanager
def _silenced_stderr():
    """Silence fd-level stderr while probing the packed kernel.

    An unsupported Mosaic relayout may emit MLIR diagnostics on the C-level
    stderr before raising; the failure is handled (we fall back to the plain
    kernel), so the probe must not pollute the log.
    """
    try:
        saved = os.dup(2)
        devnull = os.open(os.devnull, os.O_WRONLY)
    except OSError:
        yield
        return
    try:
        os.dup2(devnull, 2)
        yield
    finally:
        os.dup2(saved, 2)
        os.close(saved)
        os.close(devnull)


# ---------------------------------------------------------------------------
# Kernels
# ---------------------------------------------------------------------------
def _transpose_kernel(x_ref, o_ref):
    # (C, W) -> (W, C): last-two-dims XLU transpose (plain / fallback path).
    o_ref[...] = jnp.swapaxes(x_ref[...], 0, 1)


def _transpose_pack_kernel(x_ref, o_ref):
    # (C, rows*k) -> (rows, k*C): transpose, then regroup k consecutive spatial
    # positions into one lane-dense output row (identical row-major bytes).
    rows, width = o_ref.shape
    o_ref[...] = jnp.swapaxes(x_ref[...], 0, 1).reshape(rows, width)


# ---------------------------------------------------------------------------
# Tiling heuristics (all static Python; padding-aware per the perf review)
# ---------------------------------------------------------------------------
def _choose_pack_factor(c, hw, itemsize):
    """Spatial positions packed per output row (1 = no packing).

    Only exact packings (hw % k == 0) are used so the packed output array is a
    bit-exact row-major view of the NHWC result.
    """
    if c % 128 == 0:
        return 1                        # already lane-dense

    def util(width):
        return width / _round_up(width, 128)

    base = util(c)
    best_k, best_util = 1, base
    cands = {128 // math.gcd(c, 128)}   # smallest k with k*c % 128 == 0
    cands.update(k for k in range(2, 257) if hw % k == 0)
    for k in sorted(cands):
        if hw % k != 0 or hw // k < 8:  # keep >= 8 packed rows (sublane-friendly)
            continue
        width = k * c
        if width * itemsize > _MAX_PACKED_ROW_BYTES:
            continue
        u = util(width)
        if u > best_util + 1e-9:
            best_k, best_util = k, u
    # Only pay the in-kernel relayout when the lane-utilization win is real.
    if best_util < 1.5 * base:
        return 1
    return best_k


def _choose_rows_per_block(rows, k, c, itemsize, sub, bs):
    """Packed-output rows per block (for k == 1 a 'row' is one hw position).

    Honors the BlockSpec (8, 128) rule: the output block's second-minor dim
    must be a multiple of 8 (or the full dim) and the input block's hw extent
    (rows*k) a multiple of 128 (or the full dim) -> rows_per_block multiple of
    L.  The padded footprint of one (input + output) block pair is kept under
    _BLOCK_PAIR_BUDGET_BYTES, and rows_per_block is capped so the grid has
    >= _MIN_GRID_STEPS total steps when the tensor is big enough.
    """
    L = math.lcm(8, 128 // math.gcd(k, 128))
    if rows <= L:
        return rows                     # single full-extent hw block (tiny map)
    width_pad = _round_up(k * c, 128)
    per_row_bytes = (_round_up(c, sub) * k + width_pad) * itemsize
    budget_rows = max(int(_BLOCK_PAIR_BUDGET_BYTES // per_row_bytes), L)
    t = max(L, budget_rows // L * L)
    hw_steps_wanted = -(-_MIN_GRID_STEPS // max(bs, 1))      # ceil
    if hw_steps_wanted > 1:
        t_steps = max(L, rows // hw_steps_wanted // L * L)
        t = min(t, t_steps)
    return min(t, rows)


# ---------------------------------------------------------------------------
# Pallas wrapper
# ---------------------------------------------------------------------------
def _permute_call(x2, k, rows_per_block):
    """Build the pallas_call for the packed (k > 1) or plain (k == 1) variant."""
    bs, c, hw = x2.shape
    rows, width = hw // k, k * c
    kernel = _transpose_pack_kernel if k > 1 else _transpose_kernel
    return pl.pallas_call(
        kernel,
        out_shape=jax.ShapeDtypeStruct((bs, rows, width), x2.dtype),
        grid_spec=pltpu.PrefetchScalarGridSpec(
            num_scalar_prefetch=0,
            grid=(bs, pl.cdiv(rows, rows_per_block)),
            in_specs=[pl.BlockSpec((pl.Squeezed(), c, rows_per_block * k),
                                   lambda b, h: (b, 0, h))],
            out_specs=pl.BlockSpec((pl.Squeezed(), rows_per_block, width),
                                   lambda b, h: (b, h, 0)),
        ),
        compiler_params=pltpu.CompilerParams(
            dimension_semantics=("parallel", "parallel"),
            vmem_limit_bytes=_VMEM_LIMIT_BYTES,
        ),
    )


def yolo_permute(p):
    """NCHW -> NHWC (torch permute(0, 2, 3, 1).contiguous()) via Pallas."""
    bs, c, ny, nx = p.shape
    hw = ny * nx
    x2 = p.reshape(bs, c, hw)            # contiguous reshape, no data movement
    itemsize = jnp.dtype(p.dtype).itemsize
    sub = _sublanes(p.dtype)

    k = _choose_pack_factor(c, hw, itemsize)
    if k > 1:
        rows = hw // k
        rpb = _choose_rows_per_block(rows, k, c, itemsize, sub, bs)
        key = (bs, c, hw, k, rpb, str(jnp.dtype(p.dtype)))
        ok = _PACK_OK.get(key)
        if ok is not False:
            call = _permute_call(x2, k, rpb)
            try:
                if ok is None:
                    with _silenced_stderr():     # probe: keep failed lowering quiet
                        out = call(x2)
                else:
                    out = call(x2)
                _PACK_OK[key] = True
                return out.reshape(bs, ny, nx, c)   # free row-major reshape
            except Exception:
                # TODO(synk): the (rows*k, C) -> (rows, k*C) lane regrouping is
                # not lowerable by Mosaic on this toolchain; fall back to the
                # plain (lane-sparse-output) transpose kernel.
                _PACK_OK[key] = False

    rpb = _choose_rows_per_block(hw, 1, c, itemsize, sub, bs)
    out = _permute_call(x2, 1, rpb)(x2)
    return out.reshape(bs, ny, nx, c)


# ---------------------------------------------------------------------------
# Module port
# ---------------------------------------------------------------------------
class YOLOLayer:
    """JAX/Pallas port of model/yolov3/models.py::YOLOLayer (training path)."""

    def __init__(self, anchors, nc, img_size, yolo_index, arc):
        self.anchors = jnp.asarray(anchors, dtype=jnp.float32)
        self.na = len(anchors)
        self.nc = nc
        self.no = nc + 5
        self.nx = 0
        self.ny = 0
        self.arc = arc

    def create_grids(self, img_size=(416,), ng=(13, 13), dtype=jnp.float32):
        nx, ny = ng
        self.img_size = max(img_size)
        self.stride = self.img_size / max(ng)
        # torch.meshgrid default = 'ij' indexing
        yv, xv = jnp.meshgrid(jnp.arange(ny), jnp.arange(nx), indexing="ij")
        self.grid_xy = (
            jnp.stack((xv, yv), 2).astype(dtype).reshape(1, 1, ny, nx, 2)
        )
        self.anchor_vec = self.anchors / self.stride
        self.anchor_wh = self.anchor_vec.reshape(1, self.na, 1, 1, 2).astype(dtype)
        self.ng = jnp.asarray(ng, dtype=jnp.float32)
        self.nx = nx
        self.ny = ny

    def __call__(self, p, img_size, var=None):
        bs, _, ny, nx = p.shape
        if (self.nx, self.ny) != (nx, ny):
            # TODO(synk): stateful grid creation mirrors the torch module; not
            # jit-safe if traced with varying feature-map sizes.
            self.create_grids(img_size, (nx, ny), p.dtype)
        return yolo_permute(p)


if __name__ == "__main__":
    # Deterministic synthetic setup (no checkpoint loading).
    anchors = [(10.0, 13.0), (16.0, 30.0), (33.0, 23.0)]
    nc = 3                       # num classes
    na = len(anchors)
    bs, ny, nx = 2, 16, 16
    channels = na * (nc + 5)     # 24
    img_size = (128, 128)        # stride = 128 / 16 = 8

    k1, k2 = jax.random.split(jax.random.PRNGKey(0))
    p_in = jax.random.normal(k1, (bs, channels, ny, nx), dtype=jnp.float32)

    layer = YOLOLayer(anchors, nc, img_size, yolo_index=0, arc="default")
    out = jax.block_until_ready(layer(p_in, img_size))

    # Reference check: torch permute(0, 2, 3, 1)
    ref = jnp.transpose(p_in, (0, 2, 3, 1))
    np.testing.assert_allclose(np.asarray(out), np.asarray(ref), rtol=0, atol=0)
    assert out.shape == (bs, ny, nx, channels)
    assert layer.grid_xy.shape == (1, 1, ny, nx, 2)
    assert layer.anchor_wh.shape == (1, na, 1, 1, 2)

    # Odd spatial size (13x13 -> hw=169): exercises the cdiv tail / full-extent
    # block paths that real YOLO grid sizes hit.
    p2 = jax.random.normal(k2, (1, channels, 13, 13), dtype=jnp.float32)
    out2 = jax.block_until_ready(yolo_permute(p2))
    np.testing.assert_allclose(
        np.asarray(out2), np.asarray(jnp.transpose(p2, (0, 2, 3, 1))),
        rtol=0, atol=0)

    print("KERNEL_OK")
</pallas_src>

<mosaic_0001>
module attributes {stable_mosaic.version = 11 : i64} {
  func.func @_transpose_pack_kernel(%arg0: i32, %arg1: i32, %arg2: memref<1x24x128xf32, #tpu.memory_space<vmem>>, %arg3: memref<1x8x384xf32, #tpu.memory_space<vmem>>) attributes {dimension_semantics = [#tpu.dimension_semantics<parallel>, #tpu.dimension_semantics<parallel>], iteration_bounds = array<i64: 2, 2>, scalar_prefetch = 0 : i64, scratch_operands = 0 : i64, tpu.core_type = #tpu.core_type<tc>, window_params = [{transform_indices = @transform_0, window_bounds = array<i64: 1, 24, 128>}, {transform_indices = @transform_1, window_bounds = array<i64: 1, 8, 384>}]} {
    %c0 = arith.constant 0 : index
    %c0_0 = arith.constant 0 : index
    %c0_1 = arith.constant 0 : index
    %0 = vector.load %arg2[%c0, %c0_0, %c0_1] : memref<1x24x128xf32, #tpu.memory_space<vmem>>, vector<1x24x128xf32>
    %1 = vector.shape_cast %0 : vector<1x24x128xf32> to vector<24x128xf32>
    %2 = tpu.transpose %1, [1, 0] : vector<24x128xf32> -> vector<128x24xf32>
    %3 = vector.shape_cast %2 : vector<128x24xf32> to vector<8x384xf32>
    %c0_2 = arith.constant 0 : index
    %c0_3 = arith.constant 0 : index
    %c0_4 = arith.constant 0 : index
    %4 = vector.load %arg3[%c0_2, %c0_3, %c0_4] : memref<1x8x384xf32, #tpu.memory_space<vmem>>, vector<1x8x384xf32>
    %5 = vector.shape_cast %4 : vector<1x8x384xf32> to vector<8x384xf32>
    %6 = vector.shape_cast %3 : vector<8x384xf32> to vector<1x8x384xf32>
    tpu.vector_store %arg3[%c0_2, %c0_3, %c0_4], %6 {strides = array<i32>} : memref<1x8x384xf32, #tpu.memory_space<vmem>>, vector<1x8x384xf32>,
    return
  }
  func.func @transform_0(%arg0: i32, %arg1: i32) -> (i32, i32, i32) {
    %c0_i32 = arith.constant 0 : i32
    %c0_i32_0 = arith.constant 0 : i32
    return %arg0, %c0_i32, %arg1 : i32, i32, i32
  }
  func.func @transform_1(%arg0: i32, %arg1: i32) -> (i32, i32, i32) {
    %c0_i32 = arith.constant 0 : i32
    %c0_i32_0 = arith.constant 0 : i32
    return %arg0, %arg1, %c0_i32 : i32, i32, i32
  }
}

module attributes {stable_mosaic.version = 11 : i64} {
  func.func @_transpose_kernel(%arg0: i32, %arg1: i32, %arg2: memref<1x24x128xf32, #tpu.memory_space<vmem>>, %arg3: memref<1x128x24xf32, #tpu.memory_space<vmem>>) attributes {dimension_semantics = [#tpu.dimension_semantics<parallel>, #tpu.dimension_semantics<parallel>], iteration_bounds = array<i64: 2, 2>, scalar_prefetch = 0 : i64, scratch_operands = 0 : i64, tpu.core_type = #tpu.core_type<tc>, window_params = [{transform_indices = @transform_0, window_bounds = array<i64: 1, 24, 128>}, {transform_indices = @transform_1, window_bounds = array<i64: 1, 128, 24>}]} {
    %c0 = arith.constant 0 : index
    %c0_0 = arith.constant 0 : index
    %c0_1 = arith.constant 0 : index
    %0 = vector.load %arg2[%c0, %c0_0, %c0_1] : memref<1x24x128xf32, #tpu.memory_space<vmem>>, vector<1x24x128xf32>
    %1 = vector.shape_cast %0 : vector<1x24x128xf32> to vector<24x128xf32>
    %2 = tpu.transpose %1, [1, 0] : vector<24x128xf32> -> vector<128x24xf32>
    %c0_2 = arith.constant 0 : index
    %c0_3 = arith.constant 0 : index
    %c0_4 = arith.constant 0 : index
    %3 = vector.load %arg3[%c0_2, %c0_3, %c0_4] : memref<1x128x24xf32, #tpu.memory_space<vmem>>, vector<1x128x24xf32>
    %4 = vector.shape_cast %3 : vector<1x128x24xf32> to vector<128x24xf32>
    %5 = vector.shape_cast %2 : vector<128x24xf32> to vector<1x128x24xf32>
    tpu.vector_store %arg3[%c0_2, %c0_3, %c0_4], %5 {strides = array<i32>} : memref<1x128x24xf32, #tpu.memory_space<vmem>>, vector<1x128x24xf32>,
    return
  }
  func.func @transform_0(%arg0: i32, %arg1: i32) -> (i32, i32, i32) {
    %c0_i32 = arith.constant 0 : i32
    %c0_i32_0 = arith.constant 0 : i32
    return %arg0, %c0_i32, %arg1 : i32, i32, i32
  }
  func.func @transform_1(%arg0: i32, %arg1: i32) -> (i32, i32, i32) {
    %c0_i32 = arith.constant 0 : i32
    %c0_i32_0 = arith.constant 0 : i32
    return %arg0, %arg1, %c0_i32 : i32, i32, i32
  }
}

</mosaic_0001>

<llo_original>
// kernel: tpu_custom_call.1
$region0: #{tpu_custom_call.1}
  #allocation0 [shape = 'u32[]', space=smem, size = 0x4, offset = 0x4, fixed_abs, tag = 'smem constant byte address 0x4 - core index']
  #allocation1 [shape = 'u32[72,128]{1,0:T(1,128)}', space=vmem, size = 0x9000, scoped, tag = 'internal scratch']
  %s0 = inlined_call_operand.hbm [shape: f32[2,24,256], index: 0, kind: input, shape index: {}]
  %s1 = inlined_call_operand.vmem [shape: f32[2,256,24], index: 1, kind: output, shape index: {}]
  %s2 = sld [smem:[#allocation0]]
  $region41: #{tpu_custom_call.1} parent=0
    _
  %s4 = ssub.s32 1, %s2
  %s5 = scalar_select 0, %s4, %s2
  $region1: #{tpu_custom_call.1} parent=0
    #allocation2 [shape = 'u8[24576]{0}', space=vmem, size = 0x6000, scoped, tag = 'input window, operand 0']
    #allocation3 [shape = 's32[2]{0}', space=sflag, size = 0x8, scoped, tag = 'scoped memory for tpu_custom_call.1']
    %6 = vsyncpa [#allocation3], 0
    %s7 = scalar_lea.sflag [#allocation3], 1
    %8 = vsyncpa %s7, 0
    loop: start=0, step=1, limit=6
    $region2: #{tpu_custom_call.1} parent=1 // loop_pre_header
      _
    $region3: #{tpu_custom_call.1} parent=1 // loop_header
      %s10 = sphi 0, %s14
      %p11 = scmp.ge.s32.totalorder %s10, 6
      %s17 = sphi 0, %s29
      %s18 = sphi 0, %s25
      %s19 = sphi 0, %s17
      %s20 = sphi 0, %s18
      %s21 = sphi 0, %s19
      %s22 = sphi 0, %s20
      %s34 = sphi 0, %s36
      %s37 = sphi 0, %s34
      %s38 = sphi 0, %s37
      %s54 = sphi 0, %s38
      %s62 = sphi 0, %s64
      %s65 = sphi 0, %s62
      %s66 = sphi 0, %s65
      %s82 = sphi 0, %s66
    $region4: #{tpu_custom_call.1} parent=1 // loop_header_branch
      %13 = sbr.rel (%p11) target = $region8
    $region5: #{tpu_custom_call.1} parent=1 // loop_body
      %s15 = ssub.s32 %s10, 1
      %s16 = ssub.s32 %s10, 2
      %s23 = sadd.s32 1, %s18
      %p24 = scmp.ge.s32.totalorder %s23, 2
      %s25 = scalar_select %p24, 0, %s23
      %s26 = sadd.s32 1, %s17
      %s27 = scalar_select %p24, %s26, %s17
      %p28 = scmp.ge.s32.totalorder %s27, 2
      %s29 = scalar_select %p28, 0, %s27
      %s30 = ssub.s32 %s17, %s29
      %s31 = ssub.s32 %s18, %s25
      %s32 = sor.u32 %s30, %s31
      %p33 = scmp.eq.s32.totalorder %s32, 0
      %s35 = sadd.s32 %s34, 1
      %s36 = scalar_select %p33, %s34, %s35
      %p39 = pneg %p33
      %p40 = scmp.eq.s32.totalorder %s10, 3
      %p41 = por %p39, %p40
      %p42 = scmp.ne.s32.totalorder %s34, %s37
      %p43 = scmp.eq.s32.totalorder %s10, 0
      %p44 = por %p42, %p43
      %p45 = scmp.ne.s32.totalorder %s34, %s37
      %p46 = scmp.eq.s32.totalorder %s15, 3
      %p47 = por %p45, %p46
      %p48 = scmp.ne.s32.totalorder %s37, %s38
      %p49 = scmp.eq.s32.totalorder %s15, 0
      %p50 = por %p48, %p49
      %p51 = scmp.ne.s32.totalorder %s37, %s38
      %p52 = scmp.eq.s32.totalorder %s16, 3
      %p53 = por %p51, %p52
      %p55 = scmp.ne.s32.totalorder %s38, %s54
      %p56 = scmp.eq.s32.totalorder %s16, 0
      %p57 = por %p55, %p56
      %s58 = ssub.s32 %s17, %s29
      %s59 = ssub.s32 %s18, %s25
      %s60 = sor.u32 %s58, %s59
      %p61 = scmp.eq.s32.totalorder %s60, 0
      %s63 = sadd.s32 %s62, 1
      %s64 = scalar_select %p61, %s62, %s63
      %p67 = pneg %p61
      %p68 = scmp.eq.s32.totalorder %s10, 3
      %p69 = por %p67, %p68
      %p70 = scmp.ne.s32.totalorder %s62, %s65
      %p71 = scmp.eq.s32.totalorder %s10, 0
      %p72 = por %p70, %p71
      %p73 = scmp.ne.s32.totalorder %s62, %s65
      %p74 = scmp.eq.s32.totalorder %s15, 3
      %p75 = por %p73, %p74
      %p76 = scmp.ne.s32.totalorder %s65, %s66
      %p77 = scmp.eq.s32.totalorder %s15, 0
      %p78 = por %p76, %p77
      %p79 = scmp.ne.s32.totalorder %s65, %s66
      %p80 = scmp.eq.s32.totalorder %s16, 3
      %p81 = por %p79, %p80
      %p83 = scmp.ne.s32.totalorder %s66, %s82
      %p84 = scmp.eq.s32.totalorder %s16, 0
      %p85 = por %p83, %p84
      %p86 = scmp.le.s32.totalorder 1, %s10
      %p87 = scmp.lt.s32.totalorder %s10, 5
      %p88 = pnand %p86, %p87
      %p89 = pneg %p88
      // Predicated region
      $region9: #{tpu_custom_call.1} parent=5 // pred_check
        _
      $region10: #{tpu_custom_call.1} parent=5 // pred_check_branch
        %91 = sbr.rel (%p88) target = $region12
      $region11: #{tpu_custom_call.1} parent=5 // pred_region
        %s92 = ssub.s32 %s10, 1
      $region12: #{tpu_custom_call.1} parent=5 // pred_fallthru
        _
      %p93 = scmp.lt.s32.totalorder %s10, 4
      // Predicated region
      $region13: #{tpu_custom_call.1} parent=5 // pred_check
        %p94 = pneg %p93
      $region14: #{tpu_custom_call.1} parent=5 // pred_check_branch
        %96 = sbr.rel (%p94) target = $region16
      $region15: #{tpu_custom_call.1} parent=5 // pred_region
        // Predicated region
        $region17: #{tpu_custom_call.1} parent=15 // pred_check
          %p97 = pneg %p44
        $region18: #{tpu_custom_call.1} parent=15 // pred_check_branch
          %99 = sbr.rel (%p97) target = $region20
        $region19: #{tpu_custom_call.1} parent=15 // pred_region
          %s100 = sand.u32 %s34, 1
          %s101 = scalar_lea.sflag [#allocation3], %s100
          %s102 = sand.u32 %s34, 1
          %s103 = smul.addr %s102, 24
          %s104 = scalar_lea.vmem [#allocation2], %s103
          %106 = vsyncadd %s101, 0
          %s107 = smul.addr %s17, 6
          %s108 = sadd.s32 %s18, %s107
          %s109 = smul.addr %s108, 8
          %s110 = scalar_lea.hbm %s0, %s109
          %s111 = sshll.u32 %s110, 4
          %s112 = int_to_ptr.hbm [resolvable:$true] %s111
          %s113 = sshll.u32 %s104, 4
          %s114 = int_to_ptr.vmem [resolvable:$true] %s113
          %119 = dma.hbm_to_vmem [thread:$0]  %s112, 384, %s114, %s101, 256, 128, 8
        $region20: #{tpu_custom_call.1} parent=15 // pred_fallthru
          _
      $region16: #{tpu_custom_call.1} parent=5 // pred_fallthru
        _
      %p120 = scmp.le.s32.totalorder 1, %s10
      %p121 = scmp.lt.s32.totalorder %s10, 5
      %p122 = pnand %p120, %p121
      %p123 = pneg %p122
      // Predicated region
      $region21: #{tpu_custom_call.1} parent=5 // pred_check
        _
      $region22: #{tpu_custom_call.1} parent=5 // pred_check_branch
        %125 = sbr.rel (%p122) target = $region24
      $region23: #{tpu_custom_call.1} parent=5 // pred_region
        %s126 = ssub.s32 %s10, 1
        %s127 = sand.u32 %s37, 1
        %s128 = scalar_lea.sflag [#allocation3], %s127
        %s129 = sand.u32 %s37, 1
        %s130 = smul.addr %s129, 24
        %s131 = scalar_lea.vmem [#allocation2], %s130
        // Predicated region
        $region25: #{tpu_custom_call.1} parent=23 // pred_check
          %p132 = pneg %p50
        $region26: #{tpu_custom_call.1} parent=23 // pred_check_branch
          %134 = sbr.rel (%p132) target = $region28
        $region27: #{tpu_custom_call.1} parent=23 // pred_region
          %136 = dma.done %s128, 384
        $region28: #{tpu_custom_call.1} parent=23 // pred_fallthru
          _
        %s137 = sand.u32 %s37, 1
        %s138 = scalar_lea.sflag [#allocation3], %s137
        %s139 = sand.u32 %s37, 1
        %s140 = smul.addr %s139, 24
        %s141 = scalar_lea.vmem [#allocation2], %s140
        %p142 = pneg %p50
        %p143 = pneg %p47
        %p144 = pneg %p78
        %p145 = pneg %p75
        %s146 = smul.u32 16, %s20
        %p147 = scmp.lt.s32.totalorder %s19, 1
        %s148 = scalar_select %p147, %s19, 1
        %p149 = scmp.lt.s32.totalorder %s146, 31
        %s150 = scalar_select %p149, %s146, 31
        %s151 = smul.addr %s148, 32
        %s152 = sadd.s32 %s150, %s151
        %s153 = smul.addr %s152, 8
        %s154 = scalar_lea.vmem %s1, %s153
        %s155 = smul.u32 16, %s20
        %p156 = scmp.lt.s32.totalorder %s19, 1
        %s157 = scalar_select %p156, %s19, 1
        %p158 = scmp.lt.s32.totalorder %s155, 31
        %s159 = scalar_select %p158, %s155, 31
        %s160 = smul.addr %s157, 32
        %s161 = sadd.s32 %s159, %s160
        %s162 = smul.addr %s161, 8
        %s163 = scalar_lea.vmem %s1, %s162
        %s164 = smul.u32 16, %s20
        %v165 = vld [vmem:[%s131] sm:$0xff]
        %v166 = vld [vmem:[%s131 + $0x8] sm:$0xff]
        %v167 = vld [vmem:[%s131 + $0x10] sm:$0xff]
        %168 = vxpose.xlu0.b32.start [1/16] %v165, 128
        %169 = vxpose.xlu0.b32.cont [2/16] %v166, 128
        %170 = vxpose.xlu0.b32.cont [3/16] %v167, 128
        %171 = vxpose.xlu0.b32.cont [4/16] 0.0, 128
        %172 = vxpose.xlu0.b32.cont [5/16] 0.0, 128
        %173 = vxpose.xlu0.b32.cont [6/16] 0.0, 128
        %174 = vxpose.xlu0.b32.cont [7/16] 0.0, 128
        %175 = vxpose.xlu0.b32.cont [8/16] 0.0, 128
        %176 = vxpose.xlu0.b32.cont [9/16] 0.0, 128
        %177 = vxpose.xlu0.b32.cont [10/16] 0.0, 128
        %178 = vxpose.xlu0.b32.cont [11/16] 0.0, 128
        %179 = vxpose.xlu0.b32.cont [12/16] 0.0, 128
        %180 = vxpose.xlu0.b32.cont [13/16] 0.0, 128
        %181 = vxpose.xlu0.b32.cont [14/16] 0.0, 128
        %182 = vxpose.xlu0.b32.cont [15/16] 0.0, 128
        %183 = vxpose.xlu0.b32.end [16/16] 0.0, 128
        %v184 = vpop.trf.xlu0
        %v185 = vpop.trf.xlu0
        %v186 = vpop.trf.xlu0
        %v187 = vpop.trf.xlu0
        %v188 = vpop.trf.xlu0
        %v189 = vpop.trf.xlu0
        %v190 = vpop.trf.xlu0
        %v191 = vpop.trf.xlu0
        %v192 = vpop.trf.xlu0
        %v193 = vpop.trf.xlu0
        %v194 = vpop.trf.xlu0
        %v195 = vpop.trf.xlu0
        %v196 = vpop.trf.xlu0
        %v197 = vpop.trf.xlu0
        %v198 = vpop.trf.xlu0
        %v199 = vpop.trf.xlu0
        %vm200 = vcmask 195584
        %201 = vst.msk [vmem:[%s163] sm:$0xff] %vm200, %v184
        %202 = vst.msk [vmem:[%s163 + $0x8] sm:$0xff] %vm200, %v185
        %203 = vst.msk [vmem:[%s163 + $0x10] sm:$0xff] %vm200, %v186
        %204 = vst.msk [vmem:[%s163 + $0x18] sm:$0xff] %vm200, %v187
        %205 = vst.msk [vmem:[%s163 + $0x20] sm:$0xff] %vm200, %v188
        %206 = vst.msk [vmem:[%s163 + $0x28] sm:$0xff] %vm200, %v189
        %207 = vst.msk [vmem:[%s163 + $0x30] sm:$0xff] %vm200, %v190
        %208 = vst.msk [vmem:[%s163 + $0x38] sm:$0xff] %vm200, %v191
        %209 = vst.msk [vmem:[%s163 + $0x40] sm:$0xff] %vm200, %v192
        %210 = vst.msk [vmem:[%s163 + $0x48] sm:$0xff] %vm200, %v193
        %211 = vst.msk [vmem:[%s163 + $0x50] sm:$0xff] %vm200, %v194
        %212 = vst.msk [vmem:[%s163 + $0x58] sm:$0xff] %vm200, %v195
        %213 = vst.msk [vmem:[%s163 + $0x60] sm:$0xff] %vm200, %v196
        %214 = vst.msk [vmem:[%s163 + $0x68] sm:$0xff] %vm200, %v197
        %215 = vst.msk [vmem:[%s163 + $0x70] sm:$0xff] %vm200, %v198
        %216 = vst.msk [vmem:[%s163 + $0x78] sm:$0xff] %vm200, %v199
        %s217 = smul.u32 16, %s20
        %p218 = scmp.lt.s32.totalorder %s19, 1
        %s219 = scalar_select %p218, %s19, 1
        %p220 = scmp.lt.s32.totalorder %s217, 31
        %s221 = scalar_select %p220, %s217, 31
        %s222 = smul.addr %s219, 32
        %s223 = sadd.s32 %s221, %s222
        %s224 = smul.addr %s223, 8
        %s225 = scalar_lea.vmem %s1, %s224
        // Predicated region
        $region29: #{tpu_custom_call.1} parent=23 // pred_check
          %p226 = pneg %p75
        $region30: #{tpu_custom_call.1} parent=23 // pred_check_branch
          %228 = sbr.rel (%p226) target = $region32
        $region31: #{tpu_custom_call.1} parent=23 // pred_region
          %s229 = smul.u32 16, %s20
        $region32: #{tpu_custom_call.1} parent=23 // pred_fallthru
          _
      $region24: #{tpu_custom_call.1} parent=5 // pred_fallthru
        _
      %p230 = scmp.le.s32.totalorder 2, %s10
      // Predicated region
      $region33: #{tpu_custom_call.1} parent=5 // pred_check
        %p231 = pneg %p230
      $region34: #{tpu_custom_call.1} parent=5 // pred_check_branch
        %233 = sbr.rel (%p231) target = $region36
      $region35: #{tpu_custom_call.1} parent=5 // pred_region
        %s234 = ssub.s32 %s10, 2
        // Predicated region
        $region37: #{tpu_custom_call.1} parent=35 // pred_check
          %p235 = pneg %p81
        $region38: #{tpu_custom_call.1} parent=35 // pred_check_branch
          %237 = sbr.rel (%p235) target = $region40
        $region39: #{tpu_custom_call.1} parent=35 // pred_region
          %s238 = smul.u32 16, %s22
          %p239 = scmp.lt.s32.totalorder %s21, 1
          %s240 = scalar_select %p239, %s21, 1
          %p241 = scmp.lt.s32.totalorder %s238, 31
          %s242 = scalar_select %p241, %s238, 31
          %s243 = smul.addr %s240, 32
          %s244 = sadd.s32 %s242, %s243
          %s245 = smul.addr %s244, 8
          %s246 = scalar_lea.vmem %s1, %s245
        $region40: #{tpu_custom_call.1} parent=35 // pred_fallthru
          _
      $region36: #{tpu_custom_call.1} parent=5 // pred_fallthru
        _
    $region6: #{tpu_custom_call.1} parent=1 // loop_footer
      %s14 = sadd.s32 1, %s10
    $region7: #{tpu_custom_call.1} parent=1 // loop_footer_branch
      %9 = sbr.rel target = $region3
    $region8: #{tpu_custom_call.1} parent=1 // loop_exit
      _
    %247 = vsyncpa [#allocation3], 1
    %s248 = scalar_lea.sflag [#allocation3], 1
    %249 = vsyncpa %s248, 1

</llo_original>
